<compile_context>
chip_gen: v6e
topology: v6e:2x2x1
jax: 0.10.0
libtpu: 0.0.40
codegen_flags: <defaults>
</compile_context>

<pallas_src>
import jax
import jax.numpy as jnp
from jax import lax
from jax.experimental import pallas as pl
from jax.experimental.pallas import tpu as pltpu

LANE = 128
K_MIN = 16      # min padding for tiny contraction dims (bf16 sublane tile)
OUT_MIN = 8     # min padding for the narrow f32 output


# ----------------------------- Pallas kernel ------------------------------- #
def make_tabular_kernel(n_tables):
    """Kernel: fused embedding-one-hot + 3-layer MLP (BN pre-folded)."""

    def kernel(xcat_ref, xcont_ref, *refs):
        tbl_refs = refs[:n_tables]
        (w0c_ref, b0_ref, w1_ref, b1_ref, w2_ref, b2_ref, out_ref) = refs[n_tables:]
        bm = xcont_ref.shape[0]

        # layer 0: continuous part (bn_cont folded into w0c/b0)
        h = jnp.dot(xcont_ref[...], w0c_ref[...],
                    preferred_element_type=jnp.float32)

        # layer 0: embedding part — one-hot MXU matmul against E_i @ W0_rows_i
        # (MXU is otherwise idle; avoids any in-kernel lane concat / gather).
        xcat = xcat_ref[...]
        for i, t_ref in enumerate(tbl_refs):
            ni_pad = t_ref.shape[0]
            idx = xcat[:, i:i + 1]                                   # (bm, 1)
            iota = lax.broadcasted_iota(jnp.int32, (bm, ni_pad), 1)  # (bm, ni)
            onehot = jnp.where(idx == iota, 1.0, 0.0).astype(t_ref.dtype)
            h = h + jnp.dot(onehot, t_ref[...],
                            preferred_element_type=jnp.float32)

        h = jnp.maximum(h + b0_ref[...], 0.0)

        # layer 1: (BN_1 folded) Linear + ReLU
        h = jnp.dot(h.astype(w1_ref.dtype), w1_ref[...],
                    preferred_element_type=jnp.float32)
        h = jnp.maximum(h + b1_ref[...], 0.0)

        # layer 2: (BN_2 folded) Linear, no activation — narrow (8-col) output
        h = jnp.dot(h.astype(w2_ref.dtype), w2_ref[...],
                    preferred_element_type=jnp.float32)
        out_ref[...] = (h + b2_ref[...]).astype(out_ref.dtype)

    return kernel


# ------------------------------ helpers ------------------------------------ #
def _round_up(x, m):
    return ((x + m - 1) // m) * m


def _pad2(a, rows, cols):
    return jnp.pad(a, ((0, rows - a.shape[0]), (0, cols - a.shape[1])))


def fold_bn(gamma, beta, mean, var, eps=1e-5):
    """Fold eval-mode BatchNorm1d into a per-feature affine (scale, shift)."""
    scale = gamma * lax.rsqrt(var + eps)
    shift = beta - mean * scale
    return scale, shift


def init_params(key, emb_szs, n_cont, layers, out_sz):
    """Deterministic synthetic parameters matching the module's shapes."""
    p = {}
    keys = jax.random.split(key, 32)
    ki = iter(range(32))

    # Embedding tables: fastai uses trunc_normal(std=0.01); shapes (ni, nf).
    p["emb_tables"] = [
        0.01 * jax.random.normal(keys[next(ki)], (ni, nf), jnp.float32)
        for ni, nf in emb_szs
    ]
    n_emb = sum(nf for _, nf in emb_szs)

    # bn_cont parameters (nontrivial so the folded path is exercised).
    p["bnc"] = dict(
        gamma=1.0 + 0.1 * jax.random.normal(keys[next(ki)], (n_cont,), jnp.float32),
        beta=0.1 * jax.random.normal(keys[next(ki)], (n_cont,), jnp.float32),
        mean=0.1 * jax.random.normal(keys[next(ki)], (n_cont,), jnp.float32),
        var=jnp.abs(1.0 + 0.1 * jax.random.normal(keys[next(ki)], (n_cont,), jnp.float32)),
    )

    sizes = [n_emb + n_cont] + list(layers) + [out_sz]   # get_sizes()
    p["linears"] = []
    p["bns"] = []
    for i, (n_in, n_out) in enumerate(zip(sizes[:-1], sizes[1:])):
        bound = 1.0 / jnp.sqrt(jnp.float32(n_in))
        w = jax.random.uniform(keys[next(ki)], (n_in, n_out), jnp.float32, -bound, bound)
        b = jax.random.uniform(keys[next(ki)], (n_out,), jnp.float32, -bound, bound)
        p["linears"].append((w, b[None, :]))
        if i != 0:  # BN precedes every linear except the first (use_bn=True)
            p["bns"].append(dict(
                gamma=1.0 + 0.1 * jax.random.normal(keys[next(ki)], (n_in,), jnp.float32),
                beta=0.1 * jax.random.normal(keys[next(ki)], (n_in,), jnp.float32),
                mean=0.1 * jax.random.normal(keys[next(ki)], (n_in,), jnp.float32),
                var=jnp.abs(1.0 + 0.1 * jax.random.normal(keys[next(ki)], (n_in,), jnp.float32)),
            ))
    return p, sizes


# ------------------------------ JAX wrapper -------------------------------- #
def tabular_forward(params, x_cont, x_cat, out_sz, *,
                    matmul_dtype=jnp.bfloat16, block_batch=2048):
    batch, n_cont = x_cont.shape
    n_cat = x_cat.shape[1]
    emb_tables = params["emb_tables"]
    n_embs = [t.shape[1] for t in emb_tables]
    n_emb = sum(n_embs)

    (w0, b0), (w1, b1), (w2, b2) = params["linears"]

    # --- fold bn_cont into the continuous rows of W0 / b0 -------------------
    sc, sh = fold_bn(**params["bnc"])
    w0_emb = w0[:n_emb]
    w0_cont = w0[n_emb:]
    b0 = b0 + (sh @ w0_cont)[None, :]
    w0_cont = sc[:, None] * w0_cont

    # --- fold each embedding table through its rows of W0 -> (ni, h0) -------
    folded_tbls = []
    off = 0
    for tbl, nf in zip(emb_tables, n_embs):
        folded_tbls.append(tbl @ w0_emb[off:off + nf])
        off += nf

    # --- fold BN_1 / BN_2 into W1/b1, W2/b2 ----------------------------------
    s1, t1 = fold_bn(**params["bns"][0])
    b1 = b1 + (t1 @ w1)[None, :]
    w1 = s1[:, None] * w1
    s2, t2 = fold_bn(**params["bns"][1])
    b2 = b2 + (t2 @ w2)[None, :]
    w2 = s2[:, None] * w2

    # --- padded dims: hidden dims to 128 (VMEM-only), HBM edges kept narrow --
    h0 = _round_up(w0.shape[1], LANE)
    h1 = _round_up(w1.shape[1], LANE)
    d_out = _round_up(out_sz, OUT_MIN)          # narrow f32 output (e.g. 8)
    d_cont = _round_up(n_cont, K_MIN)           # narrow bf16 input (e.g. 16)
    ni_pads = [_round_up(t.shape[0], K_MIN) for t in folded_tbls]

    # --- batch tiling: big tiles, bf16-friendly rounding, >=2 steps if able --
    bm = _round_up(min(block_batch, batch), 16)
    pb = _round_up(batch, bm)
    if pb // bm == 1 and bm >= 32:
        # ensure the "parallel" batch axis has >=2 steps (v7x 2-TC split)
        bm = _round_up(bm // 2, 16)
        pb = _round_up(batch, bm)

    # --- pack HBM-side operands (all narrow) ---------------------------------
    xcat_p = jnp.pad(x_cat.astype(jnp.int32), ((0, pb - batch), (0, 0)))
    xcont_p = _pad2(x_cont.astype(jnp.float32), pb, d_cont).astype(matmul_dtype)
    tbls_p = [_pad2(t, nip, h0).astype(matmul_dtype)
              for t, nip in zip(folded_tbls, ni_pads)]
    w0c_p = _pad2(w0_cont, d_cont, h0).astype(matmul_dtype)
    b0_p = _pad2(b0, 1, h0)                     # biases stay f32 (VPU work)
    w1_p = _pad2(w1, h0, h1).astype(matmul_dtype)
    b1_p = _pad2(b1, 1, h1)
    w2_p = _pad2(w2, h1, d_out).astype(matmul_dtype)
    b2_p = _pad2(b2, 1, d_out)

    # --- cost estimate (helps XLA schedule surrounding ops) ------------------
    flops = 2 * pb * (d_cont * h0 + sum(ni_pads) * h0 + h0 * h1 + h1 * d_out)
    bytes_accessed = (
        pb * n_cat * 4 + pb * d_cont * 2 + pb * d_out * 4
        + sum(nip * h0 for nip in ni_pads) * 2
        + d_cont * h0 * 2 + h0 * h1 * 2 + h1 * d_out * 2
        + (h0 + h1 + d_out) * 4
    )
    cost = pl.CostEstimate(flops=flops, transcendentals=0,
                           bytes_accessed=bytes_accessed)

    grid = (pb // bm,)
    in_specs = [
        pl.BlockSpec((bm, n_cat), lambda i: (i, 0)),      # cat indices (int32)
        pl.BlockSpec((bm, d_cont), lambda i: (i, 0)),     # continuous feats
    ] + [
        pl.BlockSpec((nip, h0), lambda i: (0, 0))         # folded emb tables
        for nip in ni_pads
    ] + [
        pl.BlockSpec((d_cont, h0), lambda i: (0, 0)),     # W0 cont rows
        pl.BlockSpec((1, h0), lambda i: (0, 0)),          # b0
        pl.BlockSpec((h0, h1), lambda i: (0, 0)),         # W1
        pl.BlockSpec((1, h1), lambda i: (0, 0)),          # b1
        pl.BlockSpec((h1, d_out), lambda i: (0, 0)),      # W2 (narrow out)
        pl.BlockSpec((1, d_out), lambda i: (0, 0)),       # b2
    ]

    out = pl.pallas_call(
        make_tabular_kernel(len(emb_tables)),
        out_shape=jax.ShapeDtypeStruct((pb, d_out), jnp.float32),
        grid=grid,
        in_specs=in_specs,
        out_specs=pl.BlockSpec((bm, d_out), lambda i: (i, 0)),
        compiler_params=pltpu.CompilerParams(
            dimension_semantics=("parallel",),
        ),
        cost_estimate=cost,
    )(xcat_p, xcont_p, *tbls_p, w0c_p, b0_p, w1_p, b1_p, w2_p, b2_p)

    return out[:batch, :out_sz]


# ------------------------------ Reference ---------------------------------- #
def tabular_forward_ref(params, x_cont, x_cat):
    """Pure-JAX f32 reference of the same eval-mode forward."""
    embs = [tbl[x_cat[:, i]] for i, tbl in enumerate(params["emb_tables"])]
    x_emb = jnp.concatenate(embs, axis=1)
    sc, sh = fold_bn(**params["bnc"])
    x_c = x_cont.astype(jnp.float32) * sc[None, :] + sh[None, :]
    x = jnp.concatenate([x_emb, x_c], axis=1)
    (w0, b0), (w1, b1), (w2, b2) = params["linears"]
    s1, t1 = fold_bn(**params["bns"][0])
    s2, t2 = fold_bn(**params["bns"][1])
    h = jnp.maximum(x @ w0 + b0, 0.0)
    h = jnp.maximum((h * s1[None, :] + t1[None, :]) @ w1 + b1, 0.0)
    return (h * s2[None, :] + t2[None, :]) @ w2 + b2


# --------------------------------- Main ------------------------------------ #
if __name__ == "__main__":
    # Module hyperparameters (small, consistent with the forward pass).
    emb_szs = [(10, 4), (8, 3)]   # two categorical features -> n_emb = 7
    n_cont = 5
    layers = [32, 16]
    out_sz = 2
    batch = 8

    key = jax.random.PRNGKey(0)
    kp, kx, kc = jax.random.split(key, 3)
    params, sizes = init_params(kp, emb_szs, n_cont, layers, out_sz)

    x_cont = jax.random.normal(kx, (batch, n_cont), jnp.float32)
    x_cat = jnp.stack(
        [jax.random.randint(jax.random.fold_in(kc, i), (batch,), 0, ni)
         for i, (ni, _) in enumerate(emb_szs)],
        axis=1,
    ).astype(jnp.int32)

    out = tabular_forward(params, x_cont, x_cat, out_sz)
    out = jax.block_until_ready(out)

    ref = tabular_forward_ref(params, x_cont, x_cat)
    assert out.shape == (batch, out_sz), out.shape
    # bf16 MXU operands with f32 accumulation -> loose-ish tolerance vs f32 ref.
    assert jnp.allclose(out, ref, atol=5e-2, rtol=5e-2), "mismatch vs reference"

    # TODO(synk): emb_drop / per-layer dropout are identity in eval mode and
    # omitted; y_range is None so no sigmoid-rescale path is emitted.
    print("KERNEL_OK")
</pallas_src>

<mosaic_0001>
module attributes {stable_mosaic.version = 11 : i64} {
  func.func @kernel(%arg0: i32, %arg1: memref<16x2xi32, #tpu.memory_space<vmem>>, %arg2: memref<16x16xbf16, #tpu.memory_space<vmem>>, %arg3: memref<16x128xbf16, #tpu.memory_space<vmem>>, %arg4: memref<16x128xbf16, #tpu.memory_space<vmem>>, %arg5: memref<16x128xbf16, #tpu.memory_space<vmem>>, %arg6: memref<1x128xf32, #tpu.memory_space<vmem>>, %arg7: memref<128x128xbf16, #tpu.memory_space<vmem>>, %arg8: memref<1x128xf32, #tpu.memory_space<vmem>>, %arg9: memref<128x8xbf16, #tpu.memory_space<vmem>>, %arg10: memref<1x8xf32, #tpu.memory_space<vmem>>, %arg11: memref<16x8xf32, #tpu.memory_space<vmem>>) attributes {dimension_semantics = [#tpu.dimension_semantics<parallel>], iteration_bounds = array<i64: 1>, scalar_prefetch = 0 : i64, scratch_operands = 0 : i64, tpu.core_type = #tpu.core_type<tc>, window_params = [{transform_indices = @transform_0, window_bounds = array<i64: 16, 2>}, {transform_indices = @transform_1, window_bounds = array<i64: 16, 16>}, {pipeline_mode = #tpu.pipeline_mode<synchronous>, transform_indices = @transform_2, window_bounds = array<i64: 16, 128>}, {pipeline_mode = #tpu.pipeline_mode<synchronous>, transform_indices = @transform_3, window_bounds = array<i64: 16, 128>}, {pipeline_mode = #tpu.pipeline_mode<synchronous>, transform_indices = @transform_4, window_bounds = array<i64: 16, 128>}, {pipeline_mode = #tpu.pipeline_mode<synchronous>, transform_indices = @transform_5, window_bounds = array<i64: 1, 128>}, {pipeline_mode = #tpu.pipeline_mode<synchronous>, transform_indices = @transform_6, window_bounds = array<i64: 128, 128>}, {pipeline_mode = #tpu.pipeline_mode<synchronous>, transform_indices = @transform_7, window_bounds = array<i64: 1, 128>}, {pipeline_mode = #tpu.pipeline_mode<synchronous>, transform_indices = @transform_8, window_bounds = array<i64: 128, 8>}, {pipeline_mode = #tpu.pipeline_mode<synchronous>, transform_indices = @transform_9, window_bounds = array<i64: 1, 8>}, {transform_indices = @transform_10, window_bounds = array<i64: 16, 8>}]} {
    %c0 = arith.constant 0 : index
    %c0_0 = arith.constant 0 : index
    %0 = vector.load %arg2[%c0, %c0_0] : memref<16x16xbf16, #tpu.memory_space<vmem>>, vector<16x16xbf16>
    %c0_1 = arith.constant 0 : index
    %c0_2 = arith.constant 0 : index
    %1 = vector.load %arg5[%c0_1, %c0_2] : memref<16x128xbf16, #tpu.memory_space<vmem>>, vector<16x128xbf16>
    %cst = arith.constant dense<0.000000e+00> : vector<16x128xf32>
    %2 = tpu.matmul %0, %1, %cst {dimension_numbers = #tpu.dot_dimension_numbers<[1], [0], [0], [1], [0, 0, 1, 1], [], []>} : vector<16x16xbf16>, vector<16x128xbf16>, vector<16x128xf32> -> vector<16x128xf32>
    %c0_3 = arith.constant 0 : index
    %c0_4 = arith.constant 0 : index
    %3 = vector.load %arg1[%c0_3, %c0_4] : memref<16x2xi32, #tpu.memory_space<vmem>>, vector<16x2xi32>
    %4 = vector.extract_strided_slice %3 {offsets = [0, 0], sizes = [16, 1], strides = [1, 1]} : vector<16x2xi32> to vector<16x1xi32>
    %5 = tpu.iota {dimensions = array<i32: 1>} : vector<16x16xi32>
    %6 = vector.broadcast %4 : vector<16x1xi32> to vector<16x16xi32>
    %7 = arith.cmpi eq, %6, %5 : vector<16x16xi32>
    %cst_5 = arith.constant 1.000000e+00 : f32
    %cst_6 = arith.constant 0.000000e+00 : f32
    %8 = vector.broadcast %cst_5 : f32 to vector<16x16xf32>
    %9 = vector.broadcast %cst_6 : f32 to vector<16x16xf32>
    %10 = arith.select %7, %8, %9 : vector<16x16xi1>, vector<16x16xf32>
    %11 = arith.truncf %10 : vector<16x16xf32> to vector<16x16xbf16>
    %c0_7 = arith.constant 0 : index
    %c0_8 = arith.constant 0 : index
    %12 = vector.load %arg3[%c0_7, %c0_8] : memref<16x128xbf16, #tpu.memory_space<vmem>>, vector<16x128xbf16>
    %cst_9 = arith.constant dense<0.000000e+00> : vector<16x128xf32>
    %13 = tpu.matmul %11, %12, %cst_9 {dimension_numbers = #tpu.dot_dimension_numbers<[1], [0], [0], [1], [0, 0, 1, 1], [], []>} : vector<16x16xbf16>, vector<16x128xbf16>, vector<16x128xf32> -> vector<16x128xf32>
    %14 = arith.addf %2, %13 : vector<16x128xf32>
    %15 = vector.extract_strided_slice %3 {offsets = [0, 1], sizes = [16, 1], strides = [1, 1]} : vector<16x2xi32> to vector<16x1xi32>
    %16 = tpu.iota {dimensions = array<i32: 1>} : vector<16x16xi32>
    %17 = vector.broadcast %15 : vector<16x1xi32> to vector<16x16xi32>
    %18 = arith.cmpi eq, %17, %16 : vector<16x16xi32>
    %cst_10 = arith.constant 1.000000e+00 : f32
    %cst_11 = arith.constant 0.000000e+00 : f32
    %19 = vector.broadcast %cst_10 : f32 to vector<16x16xf32>
    %20 = vector.broadcast %cst_11 : f32 to vector<16x16xf32>
    %21 = arith.select %18, %19, %20 : vector<16x16xi1>, vector<16x16xf32>
    %22 = arith.truncf %21 : vector<16x16xf32> to vector<16x16xbf16>
    %c0_12 = arith.constant 0 : index
    %c0_13 = arith.constant 0 : index
    %23 = vector.load %arg4[%c0_12, %c0_13] : memref<16x128xbf16, #tpu.memory_space<vmem>>, vector<16x128xbf16>
    %cst_14 = arith.constant dense<0.000000e+00> : vector<16x128xf32>
    %24 = tpu.matmul %22, %23, %cst_14 {dimension_numbers = #tpu.dot_dimension_numbers<[1], [0], [0], [1], [0, 0, 1, 1], [], []>} : vector<16x16xbf16>, vector<16x128xbf16>, vector<16x128xf32> -> vector<16x128xf32>
    %25 = arith.addf %14, %24 : vector<16x128xf32>
    %c0_15 = arith.constant 0 : index
    %c0_16 = arith.constant 0 : index
    %26 = vector.load %arg6[%c0_15, %c0_16] : memref<1x128xf32, #tpu.memory_space<vmem>>, vector<1x128xf32>
    %27 = vector.broadcast %26 : vector<1x128xf32> to vector<16x128xf32>
    %28 = arith.addf %25, %27 : vector<16x128xf32>
    %cst_17 = arith.constant 0.000000e+00 : f32
    %29 = vector.broadcast %cst_17 : f32 to vector<16x128xf32>
    %30 = arith.maximumf %28, %29 : vector<16x128xf32>
    %31 = arith.truncf %30 : vector<16x128xf32> to vector<16x128xbf16>
    %c0_18 = arith.constant 0 : index
    %c0_19 = arith.constant 0 : index
    %32 = vector.load %arg7[%c0_18, %c0_19] : memref<128x128xbf16, #tpu.memory_space<vmem>>, vector<128x128xbf16>
    %cst_20 = arith.constant dense<0.000000e+00> : vector<16x128xf32>
    %33 = tpu.matmul %31, %32, %cst_20 {dimension_numbers = #tpu.dot_dimension_numbers<[1], [0], [0], [1], [0, 0, 1, 1], [], []>} : vector<16x128xbf16>, vector<128x128xbf16>, vector<16x128xf32> -> vector<16x128xf32>
    %c0_21 = arith.constant 0 : index
    %c0_22 = arith.constant 0 : index
    %34 = vector.load %arg8[%c0_21, %c0_22] : memref<1x128xf32, #tpu.memory_space<vmem>>, vector<1x128xf32>
    %35 = vector.broadcast %34 : vector<1x128xf32> to vector<16x128xf32>
    %36 = arith.addf %33, %35 : vector<16x128xf32>
    %cst_23 = arith.constant 0.000000e+00 : f32
    %37 = vector.broadcast %cst_23 : f32 to vector<16x128xf32>
    %38 = arith.maximumf %36, %37 : vector<16x128xf32>
    %39 = arith.truncf %38 : vector<16x128xf32> to vector<16x128xbf16>
    %c0_24 = arith.constant 0 : index
    %c0_25 = arith.constant 0 : index
    %40 = vector.load %arg9[%c0_24, %c0_25] : memref<128x8xbf16, #tpu.memory_space<vmem>>, vector<128x8xbf16>
    %cst_26 = arith.constant dense<0.000000e+00> : vector<16x8xf32>
    %41 = tpu.matmul %39, %40, %cst_26 {dimension_numbers = #tpu.dot_dimension_numbers<[1], [0], [0], [1], [0, 0, 1, 1], [], []>} : vector<16x128xbf16>, vector<128x8xbf16>, vector<16x8xf32> -> vector<16x8xf32>
    %c0_27 = arith.constant 0 : index
    %c0_28 = arith.constant 0 : index
    %42 = vector.load %arg10[%c0_27, %c0_28] : memref<1x8xf32, #tpu.memory_space<vmem>>, vector<1x8xf32>
    %43 = vector.broadcast %42 : vector<1x8xf32> to vector<16x8xf32>
    %44 = arith.addf %41, %43 : vector<16x8xf32>
    %c0_29 = arith.constant 0 : index
    %c0_30 = arith.constant 0 : index
    %45 = vector.load %arg11[%c0_29, %c0_30] : memref<16x8xf32, #tpu.memory_space<vmem>>, vector<16x8xf32>
    tpu.vector_store %arg11[%c0_29, %c0_30], %44 {strides = array<i32>} : memref<16x8xf32, #tpu.memory_space<vmem>>, vector<16x8xf32>,
    return
  }
  func.func @transform_0(%arg0: i32) -> (i32, i32) {
    %c0_i32 = arith.constant 0 : i32
    %c0_i32_0 = arith.constant 0 : i32
    return %arg0, %c0_i32 : i32, i32
  }
  func.func @transform_1(%arg0: i32) -> (i32, i32) {
    %c0_i32 = arith.constant 0 : i32
    %c0_i32_0 = arith.constant 0 : i32
    return %arg0, %c0_i32 : i32, i32
  }
  func.func @transform_2(%arg0: i32) -> (i32, i32) {
    %c0_i32 = arith.constant 0 : i32
    %c0_i32_0 = arith.constant 0 : i32
    %c0_i32_1 = arith.constant 0 : i32
    return %c0_i32, %c0_i32_0 : i32, i32
  }
  func.func @transform_3(%arg0: i32) -> (i32, i32) {
    %c0_i32 = arith.constant 0 : i32
    %c0_i32_0 = arith.constant 0 : i32
    %c0_i32_1 = arith.constant 0 : i32
    return %c0_i32, %c0_i32_0 : i32, i32
  }
  func.func @transform_4(%arg0: i32) -> (i32, i32) {
    %c0_i32 = arith.constant 0 : i32
    %c0_i32_0 = arith.constant 0 : i32
    %c0_i32_1 = arith.constant 0 : i32
    return %c0_i32, %c0_i32_0 : i32, i32
  }
  func.func @transform_5(%arg0: i32) -> (i32, i32) {
    %c0_i32 = arith.constant 0 : i32
    %c0_i32_0 = arith.constant 0 : i32
    %c0_i32_1 = arith.constant 0 : i32
    return %c0_i32, %c0_i32_0 : i32, i32
  }
  func.func @transform_6(%arg0: i32) -> (i32, i32) {
    %c0_i32 = arith.constant 0 : i32
    %c0_i32_0 = arith.constant 0 : i32
    %c0_i32_1 = arith.constant 0 : i32
    return %c0_i32, %c0_i32_0 : i32, i32
  }
  func.func @transform_7(%arg0: i32) -> (i32, i32) {
    %c0_i32 = arith.constant 0 : i32
    %c0_i32_0 = arith.constant 0 : i32
    %c0_i32_1 = arith.constant 0 : i32
    return %c0_i32, %c0_i32_0 : i32, i32
  }
  func.func @transform_8(%arg0: i32) -> (i32, i32) {
    %c0_i32 = arith.constant 0 : i32
    %c0_i32_0 = arith.constant 0 : i32
    %c0_i32_1 = arith.constant 0 : i32
    return %c0_i32, %c0_i32_0 : i32, i32
  }
  func.func @transform_9(%arg0: i32) -> (i32, i32) {
    %c0_i32 = arith.constant 0 : i32
    %c0_i32_0 = arith.constant 0 : i32
    %c0_i32_1 = arith.constant 0 : i32
    return %c0_i32, %c0_i32_0 : i32, i32
  }
  func.func @transform_10(%arg0: i32) -> (i32, i32) {
    %c0_i32 = arith.constant 0 : i32
    %c0_i32_0 = arith.constant 0 : i32
    return %arg0, %c0_i32 : i32, i32
  }
}

</mosaic_0001>

<llo_original>
// kernel: tpu_custom_call.1
$region0: #{tpu_custom_call.1}
  #allocation0 [shape = 'u32[]', space=smem, size = 0x4, offset = 0x4, fixed_abs, tag = 'smem constant byte address 0x4 - core index']
  #allocation1 [shape = 'u32[144,128]{1,0:T(1,128)}', space=vmem, size = 0x12000, scoped, tag = 'internal scratch']
  %s0 = inlined_call_operand.vmem [shape: s32[16,2], index: 0, kind: input, shape index: {}]
  %s1 = inlined_call_operand.vmem [shape: bf16[16,16], index: 1, kind: input, shape index: {}]
  %s2 = inlined_call_operand.vmem [shape: bf16[16,128], index: 2, kind: input, shape index: {}]
  %s3 = inlined_call_operand.vmem [shape: bf16[16,128], index: 3, kind: input, shape index: {}]
  %s4 = inlined_call_operand.vmem [shape: bf16[16,128], index: 4, kind: input, shape index: {}]
  %s5 = inlined_call_operand.hbm [shape: f32[1,128], index: 5, kind: input, shape index: {}]
  %s6 = inlined_call_operand.vmem [shape: bf16[128,128], index: 6, kind: input, shape index: {}]
  %s7 = inlined_call_operand.hbm [shape: f32[1,128], index: 7, kind: input, shape index: {}]
  %s8 = inlined_call_operand.vmem [shape: bf16[128,8], index: 8, kind: input, shape index: {}]
  %s9 = inlined_call_operand.vmem [shape: f32[1,8], index: 9, kind: input, shape index: {}]
  %s10 = inlined_call_operand.vmem [shape: f32[16,8], index: 10, kind: output, shape index: {}]
  %s11 = sld [smem:[#allocation0]]
  $region58: #{tpu_custom_call.1} parent=0
    _
  %s13 = ssub.s32 1, %s11
  %s14 = scalar_select 0, %s13, %s11
  $region1: #{tpu_custom_call.1} parent=0
    #allocation2 [shape = 'u8[512]{0}', space=vmem, size = 0x400, scoped, tag = 'input window, operand 5, single buffered']
    #allocation3 [shape = 's32[1]{0}', space=sflag, size = 0x4, scoped, tag = 'scoped memory for tpu_custom_call.1']
    #allocation4 [shape = 'u8[512]{0}', space=vmem, size = 0x400, scoped, tag = 'input window, operand 7, single buffered']
    #allocation5 [shape = 's32[1]{0}', space=sflag, size = 0x4, scoped, tag = 'scoped memory for tpu_custom_call.1']
    %15 = vsyncpa [#allocation3], 0
    %16 = vsyncpa [#allocation5], 0
    // Predicated region
    $region2: #{tpu_custom_call.1} parent=1 // pred_check
      _
    $region3: #{tpu_custom_call.1} parent=1 // pred_check_branch
      %18 = sbr.rel (0) target = $region5
    $region4: #{tpu_custom_call.1} parent=1 // pred_region
      _
    $region5: #{tpu_custom_call.1} parent=1 // pred_fallthru
      _
    // Predicated region
    $region6: #{tpu_custom_call.1} parent=1 // pred_check
      _
    $region7: #{tpu_custom_call.1} parent=1 // pred_check_branch
      %20 = sbr.rel (0) target = $region9
    $region8: #{tpu_custom_call.1} parent=1 // pred_region
      _
    $region9: #{tpu_custom_call.1} parent=1 // pred_fallthru
      _
    // Predicated region
    $region10: #{tpu_custom_call.1} parent=1 // pred_check
      _
    $region11: #{tpu_custom_call.1} parent=1 // pred_check_branch
      %22 = sbr.rel (0) target = $region13
    $region12: #{tpu_custom_call.1} parent=1 // pred_region
      _
    $region13: #{tpu_custom_call.1} parent=1 // pred_fallthru
      _
    // Predicated region
    $region14: #{tpu_custom_call.1} parent=1 // pred_check
      _
    $region15: #{tpu_custom_call.1} parent=1 // pred_check_branch
      %24 = sbr.rel (0) target = $region17
    $region16: #{tpu_custom_call.1} parent=1 // pred_region
      _
    $region17: #{tpu_custom_call.1} parent=1 // pred_fallthru
      _
    // Predicated region
    $region18: #{tpu_custom_call.1} parent=1 // pred_check
      _
    $region19: #{tpu_custom_call.1} parent=1 // pred_check_branch
      %26 = sbr.rel (0) target = $region21
    $region20: #{tpu_custom_call.1} parent=1 // pred_region
      _
    $region21: #{tpu_custom_call.1} parent=1 // pred_fallthru
      _
    // Predicated region
    $region22: #{tpu_custom_call.1} parent=1 // pred_check
      _
    $region23: #{tpu_custom_call.1} parent=1 // pred_check_branch
      %28 = sbr.rel (0) target = $region25
    $region24: #{tpu_custom_call.1} parent=1 // pred_region
      %s30 = ssub.s32 16, 16
      %31 = vsyncadd [#allocation3], %s30
      %s33 = sshll.u32 [#allocation2], 4
      %s34 = int_to_ptr.vmem [resolvable:$true] %s33
      %36 = dma.hbm_to_vmem [thread:$0]  %s5, 16, %s34, [#allocation3]
    $region25: #{tpu_custom_call.1} parent=1 // pred_fallthru
      _
    // Predicated region
    $region26: #{tpu_custom_call.1} parent=1 // pred_check
      _
    $region27: #{tpu_custom_call.1} parent=1 // pred_check_branch
      %38 = sbr.rel (0) target = $region29
    $region28: #{tpu_custom_call.1} parent=1 // pred_region
      _
    $region29: #{tpu_custom_call.1} parent=1 // pred_fallthru
      _
    // Predicated region
    $region30: #{tpu_custom_call.1} parent=1 // pred_check
      _
    $region31: #{tpu_custom_call.1} parent=1 // pred_check_branch
      %40 = sbr.rel (0) target = $region33
    $region32: #{tpu_custom_call.1} parent=1 // pred_region
      %s42 = ssub.s32 16, 16
      %43 = vsyncadd [#allocation5], %s42
      %s45 = sshll.u32 [#allocation4], 4
      %s46 = int_to_ptr.vmem [resolvable:$true] %s45
      %48 = dma.hbm_to_vmem [thread:$0]  %s7, 16, %s46, [#allocation5]
    $region33: #{tpu_custom_call.1} parent=1 // pred_fallthru
      _
    // Predicated region
    $region34: #{tpu_custom_call.1} parent=1 // pred_check
      _
    $region35: #{tpu_custom_call.1} parent=1 // pred_check_branch
      %50 = sbr.rel (0) target = $region37
    $region36: #{tpu_custom_call.1} parent=1 // pred_region
      _
    $region37: #{tpu_custom_call.1} parent=1 // pred_fallthru
      _
    // Predicated region
    $region38: #{tpu_custom_call.1} parent=1 // pred_check
      _
    $region39: #{tpu_custom_call.1} parent=1 // pred_check_branch
      %52 = sbr.rel (0) target = $region41
    $region40: #{tpu_custom_call.1} parent=1 // pred_region
      _
    $region41: #{tpu_custom_call.1} parent=1 // pred_fallthru
      _
    // Predicated region
    $region42: #{tpu_custom_call.1} parent=1 // pred_check
      _
    $region43: #{tpu_custom_call.1} parent=1 // pred_check_branch
      %54 = sbr.rel (0) target = $region45
    $region44: #{tpu_custom_call.1} parent=1 // pred_region
      %55 = dma.done [#allocation3], 16
    $region45: #{tpu_custom_call.1} parent=1 // pred_fallthru
      _
    // Predicated region
    $region46: #{tpu_custom_call.1} parent=1 // pred_check
      _
    $region47: #{tpu_custom_call.1} parent=1 // pred_check_branch
      %57 = sbr.rel (0) target = $region49
    $region48: #{tpu_custom_call.1} parent=1 // pred_region
      %58 = dma.done [#allocation5], 16
    $region49: #{tpu_custom_call.1} parent=1 // pred_fallthru
      _
    %v60 = vld [vmem:[%s1] sm:$0xf]
    %v61 = vld [vmem:[%s1 + $0x4] sm:$0xf]
    %v62 = vld [vmem:[%s4] sm:$0xf]
    %v63 = vld [vmem:[%s4 + $0x4] sm:$0xf]
    %v64 = vld [vmem:[%s0] sm:$0xff]
    %v65 = vld [vmem:[%s0 + $0x8] sm:$0xff]
    %v66 = vlaneseq
    %v67 = vand.u32 %v66, 127
    %68 = vset.pattern.permute.xlu0 0
    %69 = vperm.xlu0 %68, %v64
    %v70 = vpop.permute.xlu0 %69
    %71 = vset.pattern.permute.xlu0 0
    %72 = vperm.xlu0 %71, %v65
    %v73 = vpop.permute.xlu0 %72
    %vm74 = vcmp.eq.s32.totalorder %v70, %v67
    %vm75 = vcmp.eq.s32.totalorder %v73, %v67
    %v76 = vsel %vm74, 1.0, 0.0
    %v77 = vsel %vm75, 1.0, 0.0
    %v78 = vpack.c.bf16 %v77, %v76
    %v79 = vld [vmem:[%s2] sm:$0xf]
    %v80 = vld [vmem:[%s2 + $0x4] sm:$0xf]
    %v83 = vunpack.c.l.b16 %v79
    %v84 = vunpack.c.l.b16 %v80
    %v85 = vpack.c.b16 %v84, %v83
    %vm87 = vcmask 130048
    %v89 = vsel %vm87, %v78, 0
    %91 = vmatprep.subr.bf16.mxu0 0
    %92 = vmatpush1.bf16.msra.mxu0 0
    %93 = vmatprep.subr.bf16.mxu0 0
    %94 = vmatpush1.bf16.msra.mxu0 0
    %95 = vmatprep.subr.bf16.mxu0 0
    %96 = vmatpush1.bf16.msra.mxu0 0
    %97 = vmatprep.subr.bf16.mxu0 0
    %98 = vmatpush1.bf16.msra.mxu0 0
    %99 = vmatprep.subr.bf16.mxu0 0
    %100 = vmatpush1.bf16.msra.mxu0 0
    %101 = vmatprep.subr.bf16.mxu0 0
    %102 = vmatpush1.bf16.msra.mxu0 0
    %103 = vmatprep.subr.bf16.mxu0 0
    %104 = vmatpush1.bf16.msra.mxu0 0
    %105 = vmatprep.subr.bf16.mxu0 0
    %106 = vmatpush1.bf16.msra.mxu0 %v85
    %107 = vmatprep.subr.bf16.mxu0 0
    %108 = vmatpush2.bf16.msra.mxu0 0
    %109 = vmatprep.subr.bf16.mxu0 0
    %110 = vmatpush2.bf16.msra.mxu0 0
    %111 = vmatprep.subr.bf16.mxu0 0
    %112 = vmatpush2.bf16.msra.mxu0 0
    %113 = vmatprep.subr.bf16.mxu0 0
    %114 = vmatpush2.bf16.msra.mxu0 0
    %115 = vmatprep.subr.bf16.mxu0 0
    %116 = vmatpush2.bf16.msra.mxu0 0
    %117 = vmatprep.subr.bf16.mxu0 0
    %118 = vmatpush2.bf16.msra.mxu0 0
    %119 = vmatprep.subr.bf16.mxu0 0
    %120 = vmatpush2.bf16.msra.mxu0 0
    %121 = vmatprep.subr.bf16.mxu0 0
    %122 = vmatpush2.bf16.msra.mxu0 0
    %123 = vmatprep.mubr.bf16.mxu0 0
    %124 = vmatmul.mubr.bf16.gmra.mxu0 %v89
    %v125 = vpop.f32.mrf.mxu0
    %v126 = vadd.f32 0.0, %v125
    %v127 = vpop.f32.mrf.mxu0
    %v128 = vpop.f32.mrf.mxu0
    %v129 = vadd.f32 0.0, %v128
    %v130 = vpop.f32.mrf.mxu0
    %131 = vdwg.mxu0
    %v134 = vunpack.c.l.b16 %v60
    %v135 = vunpack.c.l.b16 %v61
    %v136 = vpack.c.b16 %v135, %v134
    %v139 = vunpack.c.l.b16 %v62
    %v140 = vunpack.c.l.b16 %v63
    %v141 = vpack.c.b16 %v140, %v139
    %v144 = vsel %vm87, %v136, 0
    %146 = vmatprep.subr.bf16.mxu0 0
    %147 = vmatpush1.bf16.msra.mxu0 0
    %148 = vmatprep.subr.bf16.mxu0 0
    %149 = vmatpush1.bf16.msra.mxu0 0
    %150 = vmatprep.subr.bf16.mxu0 0
    %151 = vmatpush1.bf16.msra.mxu0 0
    %152 = vmatprep.subr.bf16.mxu0 0
    %153 = vmatpush1.bf16.msra.mxu0 0
    %154 = vmatprep.subr.bf16.mxu0 0
    %155 = vmatpush1.bf16.msra.mxu0 0
    %156 = vmatprep.subr.bf16.mxu0 0
    %157 = vmatpush1.bf16.msra.mxu0 0
    %158 = vmatprep.subr.bf16.mxu0 0
    %159 = vmatpush1.bf16.msra.mxu0 0
    %160 = vmatprep.subr.bf16.mxu0 0
    %161 = vmatpush1.bf16.msra.mxu0 %v141
    %162 = vmatprep.subr.bf16.mxu0 0
    %163 = vmatpush2.bf16.msra.mxu0 0
    %164 = vmatprep.subr.bf16.mxu0 0
    %165 = vmatpush2.bf16.msra.mxu0 0
    %166 = vmatprep.subr.bf16.mxu0 0
    %167 = vmatpush2.bf16.msra.mxu0 0
    %168 = vmatprep.subr.bf16.mxu0 0
    %169 = vmatpush2.bf16.msra.mxu0 0
    %170 = vmatprep.subr.bf16.mxu0 0
    %171 = vmatpush2.bf16.msra.mxu0 0
    %172 = vmatprep.subr.bf16.mxu0 0
    %173 = vmatpush2.bf16.msra.mxu0 0
    %174 = vmatprep.subr.bf16.mxu0 0
    %175 = vmatpush2.bf16.msra.mxu0 0
    %176 = vmatprep.subr.bf16.mxu0 0
    %177 = vmatpush2.bf16.msra.mxu0 0
    %178 = vmatprep.mubr.bf16.mxu0 0
    %179 = vmatmul.mubr.bf16.gmra.mxu0 %v144
    %v180 = vpop.f32.mrf.mxu0
    %v181 = vadd.f32 %v126, %v180
    %v182 = vpop.f32.mrf.mxu0
    %v183 = vpop.f32.mrf.mxu0
    %v184 = vadd.f32 %v129, %v183
    %v185 = vpop.f32.mrf.mxu0
    %186 = vdwg.mxu0
    %187 = vset.pattern.permute.xlu0 1
    %188 = vperm.xlu0 %187, %v64
    %v189 = vpop.permute.xlu0 %188
    %190 = vset.pattern.permute.xlu0 1
    %191 = vperm.xlu0 %190, %v65
    %v192 = vpop.permute.xlu0 %191
    %vm193 = vcmp.eq.s32.totalorder %v189, %v67
    %vm194 = vcmp.eq.s32.totalorder %v192, %v67
    %v195 = vsel %vm193, 1.0, 0.0
    %v196 = vsel %vm194, 1.0, 0.0
    %v197 = vpack.c.bf16 %v196, %v195
    %v198 = vld [vmem:[%s3] sm:$0xf]
    %v199 = vld [vmem:[%s3 + $0x4] sm:$0xf]
    %v202 = vunpack.c.l.b16 %v198
    %v203 = vunpack.c.l.b16 %v199
    %v204 = vpack.c.b16 %v203, %v202
    %v207 = vsel %vm87, %v197, 0
    %209 = vmatprep.subr.bf16.mxu0 0
    %210 = vmatpush1.bf16.msra.mxu0 0
    %211 = vmatprep.subr.bf16.mxu0 0
    %212 = vmatpush1.bf16.msra.mxu0 0
    %213 = vmatprep.subr.bf16.mxu0 0
    %214 = vmatpush1.bf16.msra.mxu0 0
    %215 = vmatprep.subr.bf16.mxu0 0
    %216 = vmatpush1.bf16.msra.mxu0 0
    %217 = vmatprep.subr.bf16.mxu0 0
    %218 = vmatpush1.bf16.msra.mxu0 0
    %219 = vmatprep.subr.bf16.mxu0 0
    %220 = vmatpush1.bf16.msra.mxu0 0
    %221 = vmatprep.subr.bf16.mxu0 0
    %222 = vmatpush1.bf16.msra.mxu0 0
    %223 = vmatprep.subr.bf16.mxu0 0
    %224 = vmatpush1.bf16.msra.mxu0 %v204
    %225 = vmatprep.subr.bf16.mxu0 0
    %226 = vmatpush2.bf16.msra.mxu0 0
    %227 = vmatprep.subr.bf16.mxu0 0
    %228 = vmatpush2.bf16.msra.mxu0 0
    %229 = vmatprep.subr.bf16.mxu0 0
    %230 = vmatpush2.bf16.msra.mxu0 0
    %231 = vmatprep.subr.bf16.mxu0 0
    %232 = vmatpush2.bf16.msra.mxu0 0
    %233 = vmatprep.subr.bf16.mxu0 0
    %234 = vmatpush2.bf16.msra.mxu0 0
    %235 = vmatprep.subr.bf16.mxu0 0
    %236 = vmatpush2.bf16.msra.mxu0 0
    %237 = vmatprep.subr.bf16.mxu0 0
    %238 = vmatpush2.bf16.msra.mxu0 0
    %239 = vmatprep.subr.bf16.mxu0 0
    %240 = vmatpush2.bf16.msra.mxu0 0
    %241 = vmatprep.mubr.bf16.mxu0 0
    %242 = vmatmul.mubr.bf16.gmra.mxu0 %v207
    %v243 = vpop.f32.mrf.mxu0
    %v244 = vadd.f32 0.0, %v243
    %v245 = vpop.f32.mrf.mxu0
    %v246 = vpop.f32.mrf.mxu0
    %v247 = vadd.f32 0.0, %v246
    %v248 = vpop.f32.mrf.mxu0
    %249 = vdwg.mxu0
    %v250 = vadd.f32 %v181, %v244
    %v251 = vadd.f32 %v184, %v247
    %v252 = vld [vmem:[#allocation2] sm:$0x1]
    %v254 = vlaneseq
    %v255 = vshrl.u32 %v254, 7
    %v256 = vsub.s32 0, %v255
    %v257 = vrot.slane %v252, %v256
    %v259 = vadd.f32 %v250, %v257
    %v260 = vadd.f32 %v251, %v257
    %v261 = vmax.f32 %v259, 0.0
    %v262 = vmax.f32 %v260, 0.0
    %v263 = vpack.c.bf16 %v262, %v261
    %v264 = vld [vmem:[%s6] sm:$0xf]
    %v265 = vld [vmem:[%s6 + $0x4] sm:$0xf]
    %v266 = vld [vmem:[%s6 + $0x8] sm:$0xf]
    %v267 = vld [vmem:[%s6 + $0xc] sm:$0xf]
    %v268 = vld [vmem:[%s6 + $0x10] sm:$0xf]
    %v269 = vld [vmem:[%s6 + $0x14] sm:$0xf]
    %v270 = vld [vmem:[%s6 + $0x18] sm:$0xf]
    %v271 = vld [vmem:[%s6 + $0x1c] sm:$0xf]
    %v272 = vld [vmem:[%s6 + $0x20] sm:$0xf]
    %v273 = vld [vmem:[%s6 + $0x24] sm:$0xf]
    %v274 = vld [vmem:[%s6 + $0x28] sm:$0xf]
    %v275 = vld [vmem:[%s6 + $0x2c] sm:$0xf]
    %v276 = vld [vmem:[%s6 + $0x30] sm:$0xf]
    %v277 = vld [vmem:[%s6 + $0x34] sm:$0xf]
    %v278 = vld [vmem:[%s6 + $0x38] sm:$0xf]
    %v279 = vld [vmem:[%s6 + $0x3c] sm:$0xf]
    %v280 = vld [vmem:[#allocation4] sm:$0x1]
    %v282 = vlaneseq
    %v283 = vshrl.u32 %v282, 7
    %v284 = vsub.s32 0, %v283
    %v285 = vrot.slane %v280, %v284
    %v303 = vunpack.c.l.b16 %v264
    %v304 = vunpack.c.l.b16 %v265
    %v305 = vunpack.c.l.b16 %v266
    %v306 = vunpack.c.l.b16 %v267
    %v307 = vunpack.c.l.b16 %v268
    %v308 = vunpack.c.l.b16 %v269
    %v309 = vunpack.c.l.b16 %v270
    %v310 = vunpack.c.l.b16 %v271
    %v311 = vunpack.c.l.b16 %v272
    %v312 = vunpack.c.l.b16 %v273
    %v313 = vunpack.c.l.b16 %v274
    %v314 = vunpack.c.l.b16 %v275
    %v315 = vunpack.c.l.b16 %v276
    %v316 = vunpack.c.l.b16 %v277
    %v317 = vunpack.c.l.b16 %v278
    %v318 = vunpack.c.l.b16 %v279
    %v319 = vpack.c.b16 %v304, %v303
    %v320 = vpack.c.b16 %v306, %v305
    %v321 = vpack.c.b16 %v308, %v307
    %v322 = vpack.c.b16 %v310, %v309
    %v323 = vpack.c.b16 %v312, %v311
    %v324 = vpack.c.b16 %v314, %v313
    %v325 = vpack.c.b16 %v316, %v315
    %v326 = vpack.c.b16 %v318, %v317
    %335 = vmatprep.subr.bf16.mxu0 0
    %336 = vmatpush1.bf16.msra.mxu0 %v326
    %337 = vmatprep.subr.bf16.mxu0 0
    %338 = vmatpush1.bf16.msra.mxu0 %v325
    %339 = vmatprep.subr.bf16.mxu0 0
    %340 = vmatpush1.bf16.msra.mxu0 %v324
    %341 = vmatprep.subr.bf16.mxu0 0
    %342 = vmatpush1.bf16.msra.mxu0 %v323
    %343 = vmatprep.subr.bf16.mxu0 0
    %344 = vmatpush1.bf16.msra.mxu0 %v322
    %345 = vmatprep.subr.bf16.mxu0 0
    %346 = vmatpush1.bf16.msra.mxu0 %v321
    %347 = vmatprep.subr.bf16.mxu0 0
    %348 = vmatpush1.bf16.msra.mxu0 %v320
    %349 = vmatprep.subr.bf16.mxu0 0
    %350 = vmatpush1.bf16.msra.mxu0 %v319
    %351 = vmatprep.subr.bf16.mxu0 0
    %352 = vmatpush2.bf16.msra.mxu0 0
    %353 = vmatprep.subr.bf16.mxu0 0
    %354 = vmatpush2.bf16.msra.mxu0 0
    %355 = vmatprep.subr.bf16.mxu0 0
    %356 = vmatpush2.bf16.msra.mxu0 0
    %357 = vmatprep.subr.bf16.mxu0 0
    %358 = vmatpush2.bf16.msra.mxu0 0
    %359 = vmatprep.subr.bf16.mxu0 0
    %360 = vmatpush2.bf16.msra.mxu0 0
    %361 = vmatprep.subr.bf16.mxu0 0
    %362 = vmatpush2.bf16.msra.mxu0 0
    %363 = vmatprep.subr.bf16.mxu0 0
    %364 = vmatpush2.bf16.msra.mxu0 0
    %365 = vmatprep.subr.bf16.mxu0 0
    %366 = vmatpush2.bf16.msra.mxu0 0
    %367 = vmatprep.mubr.bf16.mxu0 0
    %368 = vmatmul.mubr.bf16.gmra.mxu0 %v263
    %v369 = vpop.f32.mrf.mxu0
    %v370 = vadd.f32 %v285, %v369
    %v371 = vpop.f32.mrf.mxu0
    %v372 = vpop.f32.mrf.mxu0
    %v373 = vadd.f32 %v285, %v372
    %v374 = vpop.f32.mrf.mxu0
    %375 = vdwg.mxu0
    %v376 = vmax.f32 %v370, 0.0
    %v377 = vmax.f32 %v373, 0.0
    %v378 = vpack.c.bf16 %v377, %v376
    %v379 = vld [vmem:[%s8] sm:$0xf]
    %v380 = vld [vmem:[%s8 + $0x4] sm:$0xf]
    %v381 = vld [vmem:[%s8 + $0x8] sm:$0xf]
    %v382 = vld [vmem:[%s8 + $0xc] sm:$0xf]
    %v383 = vld [vmem:[%s8 + $0x10] sm:$0xf]
    %v384 = vld [vmem:[%s8 + $0x14] sm:$0xf]
    %v385 = vld [vmem:[%s8 + $0x18] sm:$0xf]
    %v386 = vld [vmem:[%s8 + $0x1c] sm:$0xf]
    %v387 = vld [vmem:[%s8 + $0x20] sm:$0xf]
    %v388 = vld [vmem:[%s8 + $0x24] sm:$0xf]
    %v389 = vld [vmem:[%s8 + $0x28] sm:$0xf]
    %v390 = vld [vmem:[%s8 + $0x2c] sm:$0xf]
    %v391 = vld [vmem:[%s8 + $0x30] sm:$0xf]
    %v392 = vld [vmem:[%s8 + $0x34] sm:$0xf]
    %v393 = vld [vmem:[%s8 + $0x38] sm:$0xf]
    %v394 = vld [vmem:[%s8 + $0x3c] sm:$0xf]
    %v395 = vld [vmem:[%s9] sm:$0x1]
    %v397 = vlaneseq
    %v398 = vshrl.u32 %v397, 7
    %v399 = vsub.s32 0, %v398
    %v400 = vrot.slane %v395, %v399
    %v418 = vunpack.c.l.b16 %v379
    %v419 = vunpack.c.l.b16 %v380
    %v420 = vunpack.c.l.b16 %v381
    %v421 = vunpack.c.l.b16 %v382
    %v422 = vunpack.c.l.b16 %v383
    %v423 = vunpack.c.l.b16 %v384
    %v424 = vunpack.c.l.b16 %v385
    %v425 = vunpack.c.l.b16 %v386
    %v426 = vunpack.c.l.b16 %v387
    %v427 = vunpack.c.l.b16 %v388
    %v428 = vunpack.c.l.b16 %v389
    %v429 = vunpack.c.l.b16 %v390
    %v430 = vunpack.c.l.b16 %v391
    %v431 = vunpack.c.l.b16 %v392
    %v432 = vunpack.c.l.b16 %v393
    %v433 = vunpack.c.l.b16 %v394
    %v434 = vpack.c.b16 %v419, %v418
    %v435 = vpack.c.b16 %v421, %v420
    %v436 = vpack.c.b16 %v423, %v422
    %v437 = vpack.c.b16 %v425, %v424
    %v438 = vpack.c.b16 %v427, %v426
    %v439 = vpack.c.b16 %v429, %v428
    %v440 = vpack.c.b16 %v431, %v430
    %v441 = vpack.c.b16 %v433, %v432
    %450 = vmatprep.subr.bf16.mxu0 0
    %451 = vmatpush1.bf16.msra.mxu0 %v441
    %452 = vmatprep.subr.bf16.mxu0 0
    %453 = vmatpush1.bf16.msra.mxu0 %v440
    %454 = vmatprep.subr.bf16.mxu0 0
    %455 = vmatpush1.bf16.msra.mxu0 %v439
    %456 = vmatprep.subr.bf16.mxu0 0
    %457 = vmatpush1.bf16.msra.mxu0 %v438
    %458 = vmatprep.subr.bf16.mxu0 0
    %459 = vmatpush1.bf16.msra.mxu0 %v437
    %460 = vmatprep.subr.bf16.mxu0 0
    %461 = vmatpush1.bf16.msra.mxu0 %v436
    %462 = vmatprep.subr.bf16.mxu0 0
    %463 = vmatpush1.bf16.msra.mxu0 %v435
    %464 = vmatprep.subr.bf16.mxu0 0
    %465 = vmatpush1.bf16.msra.mxu0 %v434
    %466 = vmatprep.subr.bf16.mxu0 0
    %467 = vmatpush2.bf16.msra.mxu0 0
    %468 = vmatprep.subr.bf16.mxu0 0
    %469 = vmatpush2.bf16.msra.mxu0 0
    %470 = vmatprep.subr.bf16.mxu0 0
    %471 = vmatpush2.bf16.msra.mxu0 0
    %472 = vmatprep.subr.bf16.mxu0 0
    %473 = vmatpush2.bf16.msra.mxu0 0
    %474 = vmatprep.subr.bf16.mxu0 0
    %475 = vmatpush2.bf16.msra.mxu0 0
    %476 = vmatprep.subr.bf16.mxu0 0
    %477 = vmatpush2.bf16.msra.mxu0 0
    %478 = vmatprep.subr.bf16.mxu0 0
    %479 = vmatpush2.bf16.msra.mxu0 0
    %480 = vmatprep.subr.bf16.mxu0 0
    %481 = vmatpush2.bf16.msra.mxu0 0
    %482 = vmatprep.mubr.bf16.mxu0 0
    %483 = vmatmul.mubr.bf16.gmra.mxu0 %v378
    %v484 = vpop.f32.mrf.mxu0
    %v485 = vadd.f32 %v400, %v484
    %v486 = vpop.f32.mrf.mxu0
    %v487 = vpop.f32.mrf.mxu0
    %v488 = vadd.f32 %v400, %v487
    %v489 = vpop.f32.mrf.mxu0
    %490 = vdwg.mxu0
    %vm491 = vcmask 64512
    %492 = vst.msk [vmem:[%s10] sm:$0xff] %vm491, %v485
    %493 = vst.msk [vmem:[%s10 + $0x8] sm:$0xff] %vm491, %v488
    // Predicated region
    $region50: #{tpu_custom_call.1} parent=1 // pred_check
      _
    $region51: #{tpu_custom_call.1} parent=1 // pred_check_branch
      %495 = sbr.rel (0) target = $region53
    $region52: #{tpu_custom_call.1} parent=1 // pred_region
      _
    $region53: #{tpu_custom_call.1} parent=1 // pred_fallthru
      _
    // Predicated region
    $region54: #{tpu_custom_call.1} parent=1 // pred_check
      _
    $region55: #{tpu_custom_call.1} parent=1 // pred_check_branch
      %497 = sbr.rel (0) target = $region57
    $region56: #{tpu_custom_call.1} parent=1 // pred_region
      _
    $region57: #{tpu_custom_call.1} parent=1 // pred_fallthru
      _
    %498 = vsyncpa [#allocation3], 1
    %499 = vsyncpa [#allocation5], 1

</llo_original>
